<compile_context>
chip_gen: v7x
topology: tpu7x:2x2x1
jax: 0.10.0
libtpu: 0.0.40
codegen_flags: <defaults>
</compile_context>

<pallas_src>
import functools

import jax
import jax.numpy as jnp
from jax.experimental import pallas as pl
from jax.experimental.pallas import tpu as pltpu


def _round_up(x, m):
    return ((x + m - 1) // m) * m


def _vmem_capacity_bytes():
    try:
        info = pltpu.get_tpu_info()
        cap = getattr(info, "vmem_capacity_bytes", None)
        if cap:
            return int(cap)
    except Exception:
        pass
    return 64 << 20  # conservative (v7x-sized) fallback


def _np_ce_kernel(y_pred_ref, labels_ref, out_ref, *,
                  p_indices, alpha, penalty_scale, eps, total_b, tile_b):
    y = y_pred_ref[...]                                   # (TILE_B, C) native dtype
    labels = labels_ref[...]                              # (TILE_B, 1) int32
    tb, c = y.shape

    # --- CCE term: p_true[b] = y[b, label[b]] via masked lane reduce in the
    #     native dtype (exact: one nonzero per row), then one log per row.
    class_ids = jax.lax.broadcasted_iota(jnp.int32, (tb, c), 1)
    mask = class_ids == labels                            # (TILE_B, C) bool
    sel = jnp.where(mask, y, jnp.zeros_like(y))           # stays bf16 if input is bf16
    p_true = jnp.sum(sel, axis=-1, keepdims=True).astype(jnp.float32)
    cce = -jnp.log(jnp.clip(p_true, eps, 1.0 - eps))      # (TILE_B, 1) f32

    # --- cce sample weight: label in p_indices (static compares, no extra input)
    w_bool = labels == p_indices[0]
    for i in p_indices[1:]:
        w_bool = w_bool | (labels == i)
    w = w_bool.astype(jnp.float32)                        # (TILE_B, 1)

    # --- penalty term: only the K static penalty columns, sliced from the
    #     resident VMEM tile (no B*C transcendentals, no extra input).
    pen = jnp.zeros((tb, 1), jnp.float32)
    for i in p_indices:
        col = y[:, i:i + 1].astype(jnp.float32)           # (TILE_B, 1)
        pen = pen + (-jnp.log(jnp.clip(1.0 - col, eps, 1.0 - eps)))
    pen = pen * (1.0 / penalty_scale)

    losses = w * cce + alpha * (1.0 - w) * pen            # (TILE_B, 1)

    if total_b % tile_b != 0:
        # Only the last tile is ragged (inputs are unpadded -> garbage rows);
        # full tiles skip the iota/compare/select entirely.
        pid = pl.program_id(0)
        last = pl.num_programs(0) - 1

        @pl.when(pid == last)
        def _():
            rows = jax.lax.broadcasted_iota(jnp.int32, (tb, 1), 0)
            valid = rows < (total_b - pid * tile_b)
            out_ref[...] = jnp.where(valid, losses, 0.0)

        @pl.when(pid != last)
        def _():
            out_ref[...] = losses
    else:
        out_ref[...] = losses


def negative_penalty_sparse_cce(y_pred, y_true, p_indices,
                                alpha=1.0, penalty_scale=None, eps=1e-10,
                                reduction="mean", tile_b=None):
    """y_pred: (B, C) softmax probs (any float dtype), y_true: (B,) int labels."""
    b, c = y_pred.shape
    p_indices = tuple(int(i) for i in p_indices)
    k = len(p_indices)
    if penalty_scale is None:
        penalty_scale = float(k)

    itemsize = jnp.dtype(y_pred.dtype).itemsize
    sub = {4: 8, 2: 16, 1: 32}.get(itemsize, 8)           # sublane granularity

    # Per-row VMEM bytes including 128-lane padding of narrow blocks:
    #   y_pred tile + labels (int32) + per-row f32 output.
    cpad = _round_up(c, 128)
    row_bytes = cpad * itemsize + 128 * 4 + 128 * 4

    vmem_cap = _vmem_capacity_bytes()
    small_vmem = vmem_cap <= (64 << 20)                   # v7x-class part

    if tile_b is None:
        buf_budget = (7 << 20) if small_vmem else (14 << 20)
        tile_b = buf_budget // max(row_bytes, 1)
        if small_vmem:
            # Keep >=4 grid blocks so ("parallel",) can shard across 2 TCs.
            tile_b = min(tile_b, max(sub, -(-b // 4)))
    tile_b = int(tile_b)
    tile_b = min(tile_b, _round_up(b, sub))
    tile_b = max(sub, (tile_b // sub) * sub)

    grid = pl.cdiv(b, tile_b)
    b_pad = grid * tile_b

    labels = y_true.astype(jnp.int32).reshape(b, 1)

    vmem_need = 2 * tile_b * row_bytes + (2 << 20)        # double-buffered blocks + slack
    vmem_cap_limit = (48 << 20) if small_vmem else (64 << 20)
    vmem_limit = int(min(max(vmem_need, 16 << 20), vmem_cap_limit))

    kernel = functools.partial(
        _np_ce_kernel, p_indices=p_indices, alpha=float(alpha),
        penalty_scale=float(penalty_scale), eps=float(eps),
        total_b=b, tile_b=tile_b)

    cost = pl.CostEstimate(
        flops=int(b_pad * (2 * c + 12 * k + 16)),
        transcendentals=int(b_pad * (1 + k)),
        bytes_accessed=int(b * (c * itemsize + 4) + b_pad * 4),
    )

    per_row = pl.pallas_call(
        kernel,
        out_shape=jax.ShapeDtypeStruct((b_pad, 1), jnp.float32),
        grid_spec=pltpu.PrefetchScalarGridSpec(
            num_scalar_prefetch=0,
            grid=(grid,),
            in_specs=[
                pl.BlockSpec((tile_b, c), lambda i: (i, 0)),   # y_pred tile
                pl.BlockSpec((tile_b, 1), lambda i: (i, 0)),   # labels
            ],
            out_specs=pl.BlockSpec((tile_b, 1), lambda i: (i, 0)),
        ),
        compiler_params=pltpu.CompilerParams(
            dimension_semantics=("parallel",),
            vmem_limit_bytes=vmem_limit),
        cost_estimate=cost,
    )(y_pred, labels)

    if reduction == "none":
        return per_row[:b, 0]
    total = jnp.sum(per_row)          # padded rows are written as zero
    if reduction == "sum":
        return total
    return total / jnp.float32(b)     # 'mean'


def _reference(y_pred, y_true, p_indices, alpha, penalty_scale, eps):
    # Pure-JAX reference mirroring the PyTorch module semantics (f32).
    y_pred = y_pred.astype(jnp.float32)
    b, c = y_pred.shape
    onehot = jax.nn.one_hot(y_true, c, dtype=jnp.float32)
    penalty_label = jnp.array(
        [1.0 if i in p_indices else 0.0 for i in range(c)], dtype=jnp.float32)
    w = jnp.any(jnp.array([[p] for p in p_indices]) ==
                jnp.argmax(onehot, axis=-1), axis=0).astype(jnp.float32)
    cce = jnp.sum(-onehot * jnp.log(jnp.clip(y_pred, eps, 1.0 - eps)), axis=-1)
    pen = jnp.sum(-penalty_label[None, :] *
                  jnp.log(jnp.clip(1.0 - y_pred, eps, 1.0 - eps)),
                  axis=-1) / penalty_scale
    losses = w * cce + alpha * (1.0 - w) * pen
    return jnp.mean(losses)


if __name__ == "__main__":
    eps = 1e-10
    key = jax.random.PRNGKey(0)
    k1, k2, k3, k4, k5, k6 = jax.random.split(key, 6)

    # Case 1: module-default small shape, single tile, f32.
    B, C = 8, 16
    p_indices = [1, 3, 5]
    y_pred = jax.nn.softmax(jax.random.normal(k1, (B, C), jnp.float32), axis=-1)
    y_true = jax.random.randint(k2, (B,), 0, C, dtype=jnp.int32)
    loss = negative_penalty_sparse_cce(y_pred, y_true, p_indices, eps=eps)
    loss = jax.block_until_ready(loss)
    ref = _reference(y_pred, y_true, p_indices, 1.0, float(len(p_indices)), eps)
    assert jnp.allclose(loss, ref, rtol=1e-5, atol=1e-5), (loss, ref)

    # Case 2: multi-block grid + ragged last batch tile (unpadded inputs,
    # exercises in-kernel row masking of the garbage trailing block).
    B2, C2 = 20, 24
    p_indices2 = [0, 2, 7, 9]
    y_pred2 = jax.nn.softmax(jax.random.normal(k3, (B2, C2), jnp.float32), axis=-1)
    y_true2 = jax.random.randint(k4, (B2,), 0, C2, dtype=jnp.int32)
    loss2 = negative_penalty_sparse_cce(y_pred2, y_true2, p_indices2,
                                        alpha=0.7, eps=eps, tile_b=8)
    loss2 = jax.block_until_ready(loss2)
    ref2 = _reference(y_pred2, y_true2, p_indices2, 0.7,
                      float(len(p_indices2)), eps)
    assert jnp.allclose(loss2, ref2, rtol=1e-5, atol=1e-5), (loss2, ref2)

    # Case 3: bf16 probabilities, ragged multi-tile grid (native-dtype select).
    B3, C3 = 40, 24
    p_indices3 = [2, 5, 11]
    y_pred3 = jax.nn.softmax(
        jax.random.normal(k5, (B3, C3), jnp.float32), axis=-1).astype(jnp.bfloat16)
    y_true3 = jax.random.randint(k6, (B3,), 0, C3, dtype=jnp.int32)
    loss3 = negative_penalty_sparse_cce(y_pred3, y_true3, p_indices3,
                                        alpha=0.5, eps=eps, tile_b=16)
    loss3 = jax.block_until_ready(loss3)
    ref3 = _reference(y_pred3, y_true3, p_indices3, 0.5,
                      float(len(p_indices3)), eps)
    assert jnp.allclose(loss3, ref3, rtol=1e-4, atol=1e-5), (loss3, ref3)

    print("KERNEL_OK")
</pallas_src>

<mosaic_0001>
module attributes {stable_mosaic.version = 11 : i64} {
  func.func @_np_ce_kernel(%arg0: i32, %arg1: memref<8x16xf32, #tpu.memory_space<vmem>>, %arg2: memref<8x1xi32, #tpu.memory_space<vmem>>, %arg3: memref<8x1xf32, #tpu.memory_space<vmem>>) attributes {dimension_semantics = [#tpu.dimension_semantics<parallel>], iteration_bounds = array<i64: 1>, scalar_prefetch = 0 : i64, scratch_operands = 0 : i64, tpu.core_type = #tpu.core_type<tc>, window_params = [{transform_indices = @transform_0, window_bounds = array<i64: 8, 16>}, {transform_indices = @transform_1, window_bounds = array<i64: 8, 1>}, {transform_indices = @transform_2, window_bounds = array<i64: 8, 1>}]} {
    %c0 = arith.constant 0 : index
    %c0_0 = arith.constant 0 : index
    %0 = vector.load %arg1[%c0, %c0_0] : memref<8x16xf32, #tpu.memory_space<vmem>>, vector<8x16xf32>
    %c0_1 = arith.constant 0 : index
    %c0_2 = arith.constant 0 : index
    %1 = vector.load %arg2[%c0_1, %c0_2] : memref<8x1xi32, #tpu.memory_space<vmem>>, vector<8x1xi32>
    %2 = tpu.iota {dimensions = array<i32: 1>} : vector<8x16xi32>
    %3 = vector.broadcast %1 : vector<8x1xi32> to vector<8x16xi32>
    %4 = arith.cmpi eq, %2, %3 : vector<8x16xi32>
    %cst = arith.constant 0.000000e+00 : f32
    %5 = vector.broadcast %cst : f32 to vector<8x16xf32>
    %6 = arith.select %4, %0, %5 : vector<8x16xi1>, vector<8x16xf32>
    %cst_3 = arith.constant dense<0.000000e+00> : vector<8xf32>
    %7 = vector.multi_reduction <add>, %6, %cst_3 [1] : vector<8x16xf32> to vector<8xf32>
    %8 = vector.shape_cast %7 : vector<8xf32> to vector<8x1xf32>
    %cst_4 = arith.constant 1.000000e-10 : f32
    %cst_5 = arith.constant 1.000000e+00 : f32
    %9 = vector.broadcast %cst_4 : f32 to vector<8x1xf32>
    %10 = arith.maximumf %9, %8 : vector<8x1xf32>
    %11 = vector.broadcast %cst_5 : f32 to vector<8x1xf32>
    %12 = arith.minimumf %11, %10 : vector<8x1xf32>
    %13 = math.log %12 : vector<8x1xf32>
    %cst_6 = arith.constant 0.000000e+00 : f32
    %14 = vector.broadcast %cst_6 : f32 to vector<8x1xf32>
    %15 = arith.subf %14, %13 : vector<8x1xf32>
    %c1_i32 = arith.constant 1 : i32
    %16 = vector.broadcast %c1_i32 : i32 to vector<8x1xi32>
    %17 = arith.cmpi eq, %1, %16 : vector<8x1xi32>
    %c3_i32 = arith.constant 3 : i32
    %18 = vector.broadcast %c3_i32 : i32 to vector<8x1xi32>
    %19 = arith.cmpi eq, %1, %18 : vector<8x1xi32>
    %20 = arith.ori %17, %19 : vector<8x1xi1>
    %c5_i32 = arith.constant 5 : i32
    %21 = vector.broadcast %c5_i32 : i32 to vector<8x1xi32>
    %22 = arith.cmpi eq, %1, %21 : vector<8x1xi32>
    %23 = arith.ori %20, %22 : vector<8x1xi1>
    %24 = arith.extui %23 : vector<8x1xi1> to vector<8x1xi32>
    %25 = arith.sitofp %24 : vector<8x1xi32> to vector<8x1xf32>
    %cst_7 = arith.constant 0.000000e+00 : f32
    %26 = vector.broadcast %cst_7 : f32 to vector<8x1xf32>
    %27 = vector.extract_strided_slice %0 {offsets = [0, 1], sizes = [8, 1], strides = [1, 1]} : vector<8x16xf32> to vector<8x1xf32>
    %cst_8 = arith.constant 1.000000e+00 : f32
    %28 = vector.broadcast %cst_8 : f32 to vector<8x1xf32>
    %29 = arith.subf %28, %27 : vector<8x1xf32>
    %cst_9 = arith.constant 1.000000e-10 : f32
    %cst_10 = arith.constant 1.000000e+00 : f32
    %30 = vector.broadcast %cst_9 : f32 to vector<8x1xf32>
    %31 = arith.maximumf %30, %29 : vector<8x1xf32>
    %32 = vector.broadcast %cst_10 : f32 to vector<8x1xf32>
    %33 = arith.minimumf %32, %31 : vector<8x1xf32>
    %34 = math.log %33 : vector<8x1xf32>
    %cst_11 = arith.constant 0.000000e+00 : f32
    %35 = vector.broadcast %cst_11 : f32 to vector<8x1xf32>
    %36 = arith.subf %35, %34 : vector<8x1xf32>
    %37 = arith.addf %26, %36 : vector<8x1xf32>
    %38 = vector.extract_strided_slice %0 {offsets = [0, 3], sizes = [8, 1], strides = [1, 1]} : vector<8x16xf32> to vector<8x1xf32>
    %cst_12 = arith.constant 1.000000e+00 : f32
    %39 = vector.broadcast %cst_12 : f32 to vector<8x1xf32>
    %40 = arith.subf %39, %38 : vector<8x1xf32>
    %cst_13 = arith.constant 1.000000e-10 : f32
    %cst_14 = arith.constant 1.000000e+00 : f32
    %41 = vector.broadcast %cst_13 : f32 to vector<8x1xf32>
    %42 = arith.maximumf %41, %40 : vector<8x1xf32>
    %43 = vector.broadcast %cst_14 : f32 to vector<8x1xf32>
    %44 = arith.minimumf %43, %42 : vector<8x1xf32>
    %45 = math.log %44 : vector<8x1xf32>
    %cst_15 = arith.constant 0.000000e+00 : f32
    %46 = vector.broadcast %cst_15 : f32 to vector<8x1xf32>
    %47 = arith.subf %46, %45 : vector<8x1xf32>
    %48 = arith.addf %37, %47 : vector<8x1xf32>
    %49 = vector.extract_strided_slice %0 {offsets = [0, 5], sizes = [8, 1], strides = [1, 1]} : vector<8x16xf32> to vector<8x1xf32>
    %cst_16 = arith.constant 1.000000e+00 : f32
    %50 = vector.broadcast %cst_16 : f32 to vector<8x1xf32>
    %51 = arith.subf %50, %49 : vector<8x1xf32>
    %cst_17 = arith.constant 1.000000e-10 : f32
    %cst_18 = arith.constant 1.000000e+00 : f32
    %52 = vector.broadcast %cst_17 : f32 to vector<8x1xf32>
    %53 = arith.maximumf %52, %51 : vector<8x1xf32>
    %54 = vector.broadcast %cst_18 : f32 to vector<8x1xf32>
    %55 = arith.minimumf %54, %53 : vector<8x1xf32>
    %56 = math.log %55 : vector<8x1xf32>
    %cst_19 = arith.constant 0.000000e+00 : f32
    %57 = vector.broadcast %cst_19 : f32 to vector<8x1xf32>
    %58 = arith.subf %57, %56 : vector<8x1xf32>
    %59 = arith.addf %48, %58 : vector<8x1xf32>
    %cst_20 = arith.constant 0.333333343 : f32
    %60 = vector.broadcast %cst_20 : f32 to vector<8x1xf32>
    %61 = arith.mulf %59, %60 : vector<8x1xf32>
    %62 = arith.mulf %25, %15 : vector<8x1xf32>
    %cst_21 = arith.constant 1.000000e+00 : f32
    %63 = vector.broadcast %cst_21 : f32 to vector<8x1xf32>
    %64 = arith.subf %63, %25 : vector<8x1xf32>
    %cst_22 = arith.constant 1.000000e+00 : f32
    %65 = vector.broadcast %cst_22 : f32 to vector<8x1xf32>
    %66 = arith.mulf %65, %64 : vector<8x1xf32>
    %67 = arith.mulf %66, %61 : vector<8x1xf32>
    %68 = arith.addf %62, %67 : vector<8x1xf32>
    %c0_23 = arith.constant 0 : index
    %c0_24 = arith.constant 0 : index
    %69 = vector.load %arg3[%c0_23, %c0_24] : memref<8x1xf32, #tpu.memory_space<vmem>>, vector<8x1xf32>
    tpu.vector_store %arg3[%c0_23, %c0_24], %68 {strides = array<i32>} : memref<8x1xf32, #tpu.memory_space<vmem>>, vector<8x1xf32>,
    return
  }
  func.func @transform_0(%arg0: i32) -> (i32, i32) {
    %c0_i32 = arith.constant 0 : i32
    %c0_i32_0 = arith.constant 0 : i32
    return %arg0, %c0_i32 : i32, i32
  }
  func.func @transform_1(%arg0: i32) -> (i32, i32) {
    %c0_i32 = arith.constant 0 : i32
    %c0_i32_0 = arith.constant 0 : i32
    return %arg0, %c0_i32 : i32, i32
  }
  func.func @transform_2(%arg0: i32) -> (i32, i32) {
    %c0_i32 = arith.constant 0 : i32
    %c0_i32_0 = arith.constant 0 : i32
    return %arg0, %c0_i32 : i32, i32
  }
}

</mosaic_0001>

<llo_original>
// kernel: tpu_custom_call.1
$region0: #{tpu_custom_call.1}
  #allocation0 [shape = 'u32[]', space=smem, size = 0x4, offset = 0x4, fixed_abs, tag = 'smem constant byte address 0x4 - core index']
  #allocation1 [shape = 'u32[144,128]{1,0:T(1,128)}', space=vmem, size = 0x12000, scoped, tag = 'internal scratch']
  %s0 = inlined_call_operand.vmem [shape: f32[8,16], index: 0, kind: input, shape index: {}]
  %s1 = inlined_call_operand.vmem [shape: s32[8,1], index: 1, kind: input, shape index: {}]
  %s2 = inlined_call_operand.vmem [shape: f32[8,1], index: 2, kind: output, shape index: {}]
  %s3 = sld [smem:[#allocation0]]
  $region18: #{tpu_custom_call.1} parent=0
    _
  %s5 = ssub.s32 1, %s3
  %s6 = scalar_select 0, %s5, %s3
  // Predicated region
  $region2: #{tpu_custom_call.1} parent=0 // pred_check
    _
  $region3: #{tpu_custom_call.1} parent=0 // pred_check_branch
    %8 = sbr.rel (0) target = $region5
  $region4: #{tpu_custom_call.1} parent=0 // pred_region
    _
  $region5: #{tpu_custom_call.1} parent=0 // pred_fallthru
    _
  // Predicated region
  $region6: #{tpu_custom_call.1} parent=0 // pred_check
    _
  $region7: #{tpu_custom_call.1} parent=0 // pred_check_branch
    %10 = sbr.rel (0) target = $region9
  $region8: #{tpu_custom_call.1} parent=0 // pred_region
    _
  $region9: #{tpu_custom_call.1} parent=0 // pred_fallthru
    _
  %v11 = vld [vmem:[%s0] sm:$0xff]
  %v12 = vld [vmem:[%s1] sm:$0xff]
  %v13 = vlaneseq
  %v14 = vand.u32 %v13, 127
  %15 = vset.pattern.permute.xlu0 0
  %16 = vperm.xlu0 %15, %v12
  %v17 = vpop.permute.xlu0 %16
  %vm18 = vcmp.eq.s32.totalorder %v14, %v17
  %v19 = vsel %vm18, %v11, 0.0
  %vm20 = vcmask 130048
  %v21 = vsel %vm20, %v19, 0.0
  %22 = vadd.xlane.f32.xlu0 %v21
  %v23 = vpop.xlane.xlu0 %22
  %v24 = vmax.f32 %v23, 1e-10
  %v25 = vmin.f32 %v24, 1.0
  %v26 = vlog2.pop %v25
  %v27 = vmul.f32 %v26, 0.6931472
  %v28 = vsub.f32 0.0, %v27
  %vm29 = vcmp.eq.s32.totalorder %v12, 1
  %vm30 = vcmp.eq.s32.totalorder %v12, 3
  %vm31 = vmor %vm29, %vm30
  %vm32 = vcmp.eq.s32.totalorder %v12, 5
  %vm33 = vmor %vm31, %vm32
  %v34 = vsel %vm33, 1, 0
  %v35 = vcvt.s32.f32 %v34
  %v36 = vsub.f32 1.0, %v11
  %v37 = vmax.f32 %v36, 1e-10
  %v38 = vmin.f32 %v37, 1.0
  %v39 = vlog2.pop %v38
  %v40 = vmul.f32 %v39, 0.6931472
  %v41 = vsub.f32 0.0, %v40
  %v42 = vadd.f32 %v41, 0.0
  %44 = vrot.lane.b32.xlu0 %v41, 126
  %v45 = vpop.permute.xlu0 %44
  %v47 = vadd.f32 %v42, %v45
  %48 = vrot.lane.b32.xlu0 %v41, 124
  %v49 = vpop.permute.xlu0 %48
  %v51 = vadd.f32 %v47, %v49
  %v52 = vmul.f32 %v51, 0.33333334
  %v53 = vmul.f32 %v35, %v28
  %v54 = vsub.f32 1.0, %v35
  %56 = vrot.lane.b32.xlu0 %v52, 127
  %v57 = vpop.permute.xlu0 %56
  %v59 = vmul.f32 %v54, %v57
  %v60 = vadd.f32 %v53, %v59
  %vm61 = vcmask 7168
  %62 = vst.msk [vmem:[%s2] sm:$0xff] %vm61, %v60
  // Predicated region
  $region10: #{tpu_custom_call.1} parent=0 // pred_check
    _
  $region11: #{tpu_custom_call.1} parent=0 // pred_check_branch
    %64 = sbr.rel (0) target = $region13
  $region12: #{tpu_custom_call.1} parent=0 // pred_region
    _
  $region13: #{tpu_custom_call.1} parent=0 // pred_fallthru
    _
  // Predicated region
  $region14: #{tpu_custom_call.1} parent=0 // pred_check
    _
  $region15: #{tpu_custom_call.1} parent=0 // pred_check_branch
    %66 = sbr.rel (0) target = $region17
  $region16: #{tpu_custom_call.1} parent=0 // pred_region
    _
  $region17: #{tpu_custom_call.1} parent=0 // pred_fallthru
    _

</llo_original>
